<compile_context>
chip_gen: v6e
topology: v6e:2x2x1
jax: 0.10.0
libtpu: 0.0.40
codegen_flags: <defaults>
</compile_context>

<pallas_src>
import functools

import jax
import jax.numpy as jnp
from jax.experimental import pallas as pl
from jax.experimental.pallas import tpu as pltpu

_HIDDEN = 256


def _round_up(n, m):
    return ((n + m - 1) // m) * m


def _vmem_capacity_bytes():
    """Physical VMEM per TensorCore; conservative fallback if the query fails."""
    try:
        return int(pltpu.get_tpu_info().vmem_capacity_bytes)
    except Exception:
        return 64 * 1024 * 1024  # v7x-sized (the smallest current generation)


def _generator_kernel(x_ref, w1_ref, b1_ref, w2_ref, b2_ref, o_ref):
    # Fused MLP: matmul -> bias -> ReLU -> matmul -> bias.
    # MXU inputs are cast to the weight dtype (bf16 weights => native bf16 MXU path);
    # accumulation and the element-wise epilogue stay in f32 (VPU), which is also the
    # right choice on v5e where the VPU/EUP have no bf16 support.
    w1 = w1_ref[...]
    w2 = w2_ref[...]
    x = x_ref[...].astype(w1.dtype)
    h = jnp.dot(x, w1, preferred_element_type=jnp.float32)
    h = h + b1_ref[...].astype(jnp.float32)           # (1, H) broadcast -> (Bt, H)
    h = jnp.maximum(h, 0.0)                           # ReLU in f32 on the VPU
    y = jnp.dot(h.astype(w2.dtype), w2, preferred_element_type=jnp.float32)
    y = y + b2_ref[...].astype(jnp.float32)
    o_ref[...] = y.astype(o_ref.dtype)
    # TODO(synk): if block_b were raised well past 1024, sub-tile the rows with an
    # inner lax.fori_loop so the f32 `h` intermediate stays in small scratch.


@functools.partial(jax.jit, static_argnames=("block_b",))
def generator_forward(x, w1, b1, w2, b2, *, block_b=None):
    """x: [B, input_dim]; w1: [input_dim, 256]; b1: [1, 256];
    w2: [256, output_dim]; b2: [1, output_dim]. Returns [B, output_dim]."""
    B, in_dim = x.shape
    hidden = w1.shape[1]
    out_dim = w2.shape[1]

    x_bytes = x.dtype.itemsize
    w_bytes = w1.dtype.itemsize

    # --- VMEM budget per generation -------------------------------------------
    vmem_cap = _vmem_capacity_bytes()
    # ~48 MiB on v7x (64 MiB physical), ~96-110 MiB on v5e/v6e (128 MiB physical).
    vmem_limit = min(vmem_cap * 3 // 4, 110 * 1024 * 1024)

    # Resident weights/biases.  Constant-index blocks are double-buffered by default;
    # for large weights request single buffering so they fit v7x's 64 MiB.
    weight_bytes = (in_dim * hidden + hidden + hidden * out_dim + out_dim) * w_bytes
    large_weights = weight_bytes > (8 * 1024 * 1024)
    weight_vmem = weight_bytes * (1 if large_weights else 2)

    # --- batch tile sizing ------------------------------------------------------
    if block_b is None:
        # Per-row footprint: double-buffered x & out tiles + f32 hidden intermediate.
        per_row = 2 * in_dim * x_bytes + 2 * out_dim * x_bytes + hidden * 4
        avail = max(vmem_limit // 2 - weight_vmem, 1 << 20)
        block_b = int(avail // per_row)
    block_b_eff = max(8, min((block_b // 8) * 8, 1024))
    block_b_eff = min(block_b_eff, _round_up(B, 8))
    # Guarantee >= 2 grid steps when the batch allows it so the parallel batch axis
    # can shard across both TensorCores on v7x (harmless on single-TC v5e/v6e).
    if B >= 16:
        block_b_eff = min(block_b_eff, _round_up((B + 1) // 2, 8))

    B_p = _round_up(B, block_b_eff)
    x_p = jnp.pad(x, ((0, B_p - B), (0, 0))) if B_p != B else x
    grid = (B_p // block_b_eff,)

    # --- specs ------------------------------------------------------------------
    def _resident(shape):
        if large_weights:
            return pl.BlockSpec(shape, lambda i: (0, 0), pipeline_mode=pl.Buffered(1))
        return pl.BlockSpec(shape, lambda i: (0, 0))

    flops = 2 * B_p * hidden * (in_dim + out_dim)
    bytes_accessed = (
        B_p * in_dim * x_bytes + weight_bytes + B_p * out_dim * x_bytes
    )

    y_p = pl.pallas_call(
        _generator_kernel,
        out_shape=jax.ShapeDtypeStruct((B_p, out_dim), x.dtype),
        grid_spec=pl.GridSpec(
            grid=grid,
            in_specs=[
                pl.BlockSpec((block_b_eff, in_dim), lambda i: (i, 0)),  # x tile
                _resident((in_dim, hidden)),                            # W1 (resident)
                _resident((1, hidden)),                                 # b1 (resident)
                _resident((hidden, out_dim)),                           # W2 (resident)
                _resident((1, out_dim)),                                # b2 (resident)
            ],
            out_specs=pl.BlockSpec((block_b_eff, out_dim), lambda i: (i, 0)),
        ),
        compiler_params=pltpu.CompilerParams(
            dimension_semantics=("parallel",),   # batch axis -> megacore shardable
            vmem_limit_bytes=vmem_limit,
        ),
        cost_estimate=pl.CostEstimate(
            flops=flops, transcendentals=0, bytes_accessed=bytes_accessed
        ),
    )(x_p, w1, b1, w2, b2)

    return y_p if B_p == B else y_p[:B]


def init_generator_params(key, input_dim, output_dim, hidden=_HIDDEN, dtype=jnp.float32):
    """Deterministic synthetic init (PyTorch-Linear-like uniform fan-in bounds).
    Weights stored [in_features, out_features] (PyTorch W transposed). Use
    dtype=jnp.bfloat16 to get the native bf16 MXU path on v6e/v7x (f32 accumulation
    is preserved in the kernel)."""
    k1, k2, k3, k4 = jax.random.split(key, 4)
    bound1 = 1.0 / float(input_dim) ** 0.5
    bound2 = 1.0 / float(hidden) ** 0.5
    w1 = jax.random.uniform(k1, (input_dim, hidden), dtype, -bound1, bound1)
    b1 = jax.random.uniform(k2, (1, hidden), dtype, -bound1, bound1)
    w2 = jax.random.uniform(k3, (hidden, output_dim), dtype, -bound2, bound2)
    b2 = jax.random.uniform(k4, (1, output_dim), dtype, -bound2, bound2)
    return w1, b1, w2, b2


def _reference(x, w1, b1, w2, b2):
    f32 = jnp.float32
    h = jnp.maximum(x.astype(f32) @ w1.astype(f32) + b1.astype(f32), 0.0)
    return h @ w2.astype(f32) + b2.astype(f32)


if __name__ == "__main__":
    key = jax.random.PRNGKey(0)
    kx, kp, kx2, kx3, kp3 = jax.random.split(key, 5)

    input_dim = 32
    output_dim = 16
    w1, b1, w2, b2 = init_generator_params(kp, input_dim, output_dim)

    # Case 1: small batch (single tile, unpadded feature dims, masked output store).
    batch = 8
    x = jax.random.normal(kx, (batch, input_dim), dtype=jnp.float32)
    y = generator_forward(x, w1, b1, w2, b2)
    jax.block_until_ready(y)
    ref = _reference(x, w1, b1, w2, b2)
    assert y.shape == (batch, output_dim)
    assert jnp.allclose(y, ref, atol=1e-5, rtol=1e-5)

    # Case 2: non-multiple batch (batch padding + >=2 grid steps for megacore).
    batch2 = 200
    x2 = jax.random.normal(kx2, (batch2, input_dim), dtype=jnp.float32)
    y2 = generator_forward(x2, w1, b1, w2, b2)
    jax.block_until_ready(y2)
    ref2 = _reference(x2, w1, b1, w2, b2)
    assert y2.shape == (batch2, output_dim)
    assert jnp.allclose(y2, ref2, atol=1e-5, rtol=1e-5)

    # Case 3: bf16 weights (native bf16 MXU path, f32 accumulation/epilogue).
    w1b, b1b, w2b, b2b = init_generator_params(kp3, input_dim, output_dim,
                                               dtype=jnp.bfloat16)
    batch3 = 64
    x3 = jax.random.normal(kx3, (batch3, input_dim), dtype=jnp.float32)
    y3 = generator_forward(x3, w1b, b1b, w2b, b2b)
    jax.block_until_ready(y3)
    ref3 = _reference(x3, w1b, b1b, w2b, b2b)
    assert y3.shape == (batch3, output_dim)
    assert jnp.allclose(y3, ref3, atol=5e-2, rtol=5e-2)

    print("KERNEL_OK")
</pallas_src>

<mosaic_0001>
module attributes {stable_mosaic.version = 11 : i64} {
  func.func @_generator_kernel(%arg0: i32, %arg1: memref<8x32xf32, #tpu.memory_space<vmem>>, %arg2: memref<32x256xf32, #tpu.memory_space<vmem>>, %arg3: memref<1x256xf32, #tpu.memory_space<vmem>>, %arg4: memref<256x16xf32, #tpu.memory_space<vmem>>, %arg5: memref<1x16xf32, #tpu.memory_space<vmem>>, %arg6: memref<8x16xf32, #tpu.memory_space<vmem>>) attributes {dimension_semantics = [#tpu.dimension_semantics<parallel>], iteration_bounds = array<i64: 1>, scalar_prefetch = 0 : i64, scratch_operands = 0 : i64, tpu.core_type = #tpu.core_type<tc>, window_params = [{transform_indices = @transform_0, window_bounds = array<i64: 8, 32>}, {pipeline_mode = #tpu.pipeline_mode<synchronous>, transform_indices = @transform_1, window_bounds = array<i64: 32, 256>}, {pipeline_mode = #tpu.pipeline_mode<synchronous>, transform_indices = @transform_2, window_bounds = array<i64: 1, 256>}, {pipeline_mode = #tpu.pipeline_mode<synchronous>, transform_indices = @transform_3, window_bounds = array<i64: 256, 16>}, {pipeline_mode = #tpu.pipeline_mode<synchronous>, transform_indices = @transform_4, window_bounds = array<i64: 1, 16>}, {transform_indices = @transform_5, window_bounds = array<i64: 8, 16>}]} {
    %c0 = arith.constant 0 : index
    %c0_0 = arith.constant 0 : index
    %0 = vector.load %arg2[%c0, %c0_0] : memref<32x256xf32, #tpu.memory_space<vmem>>, vector<32x256xf32>
    %c0_1 = arith.constant 0 : index
    %c0_2 = arith.constant 0 : index
    %1 = vector.load %arg4[%c0_1, %c0_2] : memref<256x16xf32, #tpu.memory_space<vmem>>, vector<256x16xf32>
    %c0_3 = arith.constant 0 : index
    %c0_4 = arith.constant 0 : index
    %2 = vector.load %arg1[%c0_3, %c0_4] : memref<8x32xf32, #tpu.memory_space<vmem>>, vector<8x32xf32>
    %cst = arith.constant dense<0.000000e+00> : vector<8x256xf32>
    %3 = tpu.matmul %2, %0, %cst {dimension_numbers = #tpu.dot_dimension_numbers<[1], [0], [0], [1], [0, 0, 1, 1], [], []>} : vector<8x32xf32>, vector<32x256xf32>, vector<8x256xf32> -> vector<8x256xf32>
    %c0_5 = arith.constant 0 : index
    %c0_6 = arith.constant 0 : index
    %4 = vector.load %arg3[%c0_5, %c0_6] : memref<1x256xf32, #tpu.memory_space<vmem>>, vector<1x256xf32>
    %5 = vector.broadcast %4 : vector<1x256xf32> to vector<8x256xf32>
    %6 = arith.addf %3, %5 : vector<8x256xf32>
    %cst_7 = arith.constant 0.000000e+00 : f32
    %7 = vector.broadcast %cst_7 : f32 to vector<8x256xf32>
    %8 = arith.maximumf %6, %7 : vector<8x256xf32>
    %cst_8 = arith.constant dense<0.000000e+00> : vector<8x16xf32>
    %9 = tpu.matmul %8, %1, %cst_8 {dimension_numbers = #tpu.dot_dimension_numbers<[1], [0], [0], [1], [0, 0, 1, 1], [], []>} : vector<8x256xf32>, vector<256x16xf32>, vector<8x16xf32> -> vector<8x16xf32>
    %c0_9 = arith.constant 0 : index
    %c0_10 = arith.constant 0 : index
    %10 = vector.load %arg5[%c0_9, %c0_10] : memref<1x16xf32, #tpu.memory_space<vmem>>, vector<1x16xf32>
    %11 = vector.broadcast %10 : vector<1x16xf32> to vector<8x16xf32>
    %12 = arith.addf %9, %11 : vector<8x16xf32>
    %c0_11 = arith.constant 0 : index
    %c0_12 = arith.constant 0 : index
    %13 = vector.load %arg6[%c0_11, %c0_12] : memref<8x16xf32, #tpu.memory_space<vmem>>, vector<8x16xf32>
    tpu.vector_store %arg6[%c0_11, %c0_12], %12 {strides = array<i32>} : memref<8x16xf32, #tpu.memory_space<vmem>>, vector<8x16xf32>,
    return
  }
  func.func @transform_0(%arg0: i32) -> (i32, i32) {
    %c0_i32 = arith.constant 0 : i32
    %c0_i32_0 = arith.constant 0 : i32
    return %arg0, %c0_i32 : i32, i32
  }
  func.func @transform_1(%arg0: i32) -> (i32, i32) {
    %c0_i32 = arith.constant 0 : i32
    %c0_i32_0 = arith.constant 0 : i32
    %c0_i32_1 = arith.constant 0 : i32
    return %c0_i32, %c0_i32_0 : i32, i32
  }
  func.func @transform_2(%arg0: i32) -> (i32, i32) {
    %c0_i32 = arith.constant 0 : i32
    %c0_i32_0 = arith.constant 0 : i32
    %c0_i32_1 = arith.constant 0 : i32
    return %c0_i32, %c0_i32_0 : i32, i32
  }
  func.func @transform_3(%arg0: i32) -> (i32, i32) {
    %c0_i32 = arith.constant 0 : i32
    %c0_i32_0 = arith.constant 0 : i32
    %c0_i32_1 = arith.constant 0 : i32
    return %c0_i32, %c0_i32_0 : i32, i32
  }
  func.func @transform_4(%arg0: i32) -> (i32, i32) {
    %c0_i32 = arith.constant 0 : i32
    %c0_i32_0 = arith.constant 0 : i32
    %c0_i32_1 = arith.constant 0 : i32
    return %c0_i32, %c0_i32_0 : i32, i32
  }
  func.func @transform_5(%arg0: i32) -> (i32, i32) {
    %c0_i32 = arith.constant 0 : i32
    %c0_i32_0 = arith.constant 0 : i32
    return %arg0, %c0_i32 : i32, i32
  }
}

</mosaic_0001>

<llo_original>
// kernel: generator_forward.1
$region0: #{generator_forward.1}
  #allocation0 [shape = 'u32[]', space=smem, size = 0x4, offset = 0x4, fixed_abs, tag = 'smem constant byte address 0x4 - core index']
  #allocation1 [shape = 'u32[144,128]{1,0:T(1,128)}', space=vmem, size = 0x12000, scoped, tag = 'internal scratch']
  %s0 = inlined_call_operand.vmem [shape: f32[8,32], index: 0, kind: input, shape index: {}]
  %s1 = inlined_call_operand.vmem [shape: f32[32,256], index: 1, kind: input, shape index: {}]
  %s2 = inlined_call_operand.vmem [shape: f32[1,256], index: 2, kind: input, shape index: {}]
  %s3 = inlined_call_operand.vmem [shape: f32[256,16], index: 3, kind: input, shape index: {}]
  %s4 = inlined_call_operand.vmem [shape: f32[1,16], index: 4, kind: input, shape index: {}]
  %s5 = inlined_call_operand.hbm [shape: f32[8,16], index: 5, kind: output, shape index: {}]
  %s6 = sld [smem:[#allocation0]]
  $region30: #{generator_forward.1} parent=0
    _
  %s8 = ssub.s32 1, %s6
  %s9 = scalar_select 0, %s8, %s6
  $region1: #{generator_forward.1} parent=0
    #allocation2 [shape = 'u8[4096]{0}', space=vmem, size = 0x1000, scoped, tag = 'output window, operand 0, single buffered']
    #allocation3 [shape = 's32[1]{0}', space=sflag, size = 0x4, scoped, tag = 'scoped memory for generator_forward.1']
    %10 = vsyncpa [#allocation3], 0
    // Predicated region
    $region2: #{generator_forward.1} parent=1 // pred_check
      _
    $region3: #{generator_forward.1} parent=1 // pred_check_branch
      %12 = sbr.rel (0) target = $region5
    $region4: #{generator_forward.1} parent=1 // pred_region
      _
    $region5: #{generator_forward.1} parent=1 // pred_fallthru
      _
    // Predicated region
    $region6: #{generator_forward.1} parent=1 // pred_check
      _
    $region7: #{generator_forward.1} parent=1 // pred_check_branch
      %14 = sbr.rel (0) target = $region9
    $region8: #{generator_forward.1} parent=1 // pred_region
      _
    $region9: #{generator_forward.1} parent=1 // pred_fallthru
      _
    // Predicated region
    $region10: #{generator_forward.1} parent=1 // pred_check
      _
    $region11: #{generator_forward.1} parent=1 // pred_check_branch
      %16 = sbr.rel (0) target = $region13
    $region12: #{generator_forward.1} parent=1 // pred_region
      _
    $region13: #{generator_forward.1} parent=1 // pred_fallthru
      _
    // Predicated region
    $region14: #{generator_forward.1} parent=1 // pred_check
      _
    $region15: #{generator_forward.1} parent=1 // pred_check_branch
      %18 = sbr.rel (0) target = $region17
    $region16: #{generator_forward.1} parent=1 // pred_region
      _
    $region17: #{generator_forward.1} parent=1 // pred_fallthru
      _
    // Predicated region
    $region18: #{generator_forward.1} parent=1 // pred_check
      _
    $region19: #{generator_forward.1} parent=1 // pred_check_branch
      %20 = sbr.rel (0) target = $region21
    $region20: #{generator_forward.1} parent=1 // pred_region
      _
    $region21: #{generator_forward.1} parent=1 // pred_fallthru
      _
    %v21 = vld [vmem:[%s1] sm:$0xff]
    %v22 = vld [vmem:[%s1 + $0x8] sm:$0xff]
    %v23 = vld [vmem:[%s1 + $0x10] sm:$0xff]
    %v24 = vld [vmem:[%s1 + $0x18] sm:$0xff]
    %v25 = vld [vmem:[%s1 + $0x20] sm:$0xff]
    %v26 = vld [vmem:[%s1 + $0x28] sm:$0xff]
    %v27 = vld [vmem:[%s1 + $0x30] sm:$0xff]
    %v28 = vld [vmem:[%s1 + $0x38] sm:$0xff]
    %v29 = vld [vmem:[%s3] sm:$0xff]
    %v30 = vld [vmem:[%s3 + $0x8] sm:$0xff]
    %v31 = vld [vmem:[%s3 + $0x10] sm:$0xff]
    %v32 = vld [vmem:[%s3 + $0x18] sm:$0xff]
    %v33 = vld [vmem:[%s3 + $0x20] sm:$0xff]
    %v34 = vld [vmem:[%s3 + $0x28] sm:$0xff]
    %v35 = vld [vmem:[%s3 + $0x30] sm:$0xff]
    %v36 = vld [vmem:[%s3 + $0x38] sm:$0xff]
    %v37 = vld [vmem:[%s3 + $0x40] sm:$0xff]
    %v38 = vld [vmem:[%s3 + $0x48] sm:$0xff]
    %v39 = vld [vmem:[%s3 + $0x50] sm:$0xff]
    %v40 = vld [vmem:[%s3 + $0x58] sm:$0xff]
    %v41 = vld [vmem:[%s3 + $0x60] sm:$0xff]
    %v42 = vld [vmem:[%s3 + $0x68] sm:$0xff]
    %v43 = vld [vmem:[%s3 + $0x70] sm:$0xff]
    %v44 = vld [vmem:[%s3 + $0x78] sm:$0xff]
    %v45 = vld [vmem:[%s3 + $0x80] sm:$0xff]
    %v46 = vld [vmem:[%s3 + $0x88] sm:$0xff]
    %v47 = vld [vmem:[%s3 + $0x90] sm:$0xff]
    %v48 = vld [vmem:[%s3 + $0x98] sm:$0xff]
    %v49 = vld [vmem:[%s3 + $0xa0] sm:$0xff]
    %v50 = vld [vmem:[%s3 + $0xa8] sm:$0xff]
    %v51 = vld [vmem:[%s3 + $0xb0] sm:$0xff]
    %v52 = vld [vmem:[%s3 + $0xb8] sm:$0xff]
    %v53 = vld [vmem:[%s3 + $0xc0] sm:$0xff]
    %v54 = vld [vmem:[%s3 + $0xc8] sm:$0xff]
    %v55 = vld [vmem:[%s3 + $0xd0] sm:$0xff]
    %v56 = vld [vmem:[%s3 + $0xd8] sm:$0xff]
    %v57 = vld [vmem:[%s3 + $0xe0] sm:$0xff]
    %v58 = vld [vmem:[%s3 + $0xe8] sm:$0xff]
    %v59 = vld [vmem:[%s3 + $0xf0] sm:$0xff]
    %v60 = vld [vmem:[%s3 + $0xf8] sm:$0xff]
    %v61 = vld [vmem:[%s0] sm:$0xff]
    %v62 = vld [vmem:[%s2] sm:$0x3]
    %v64 = vlaneseq
    %v65 = vshrl.u32 %v64, 7
    %v66 = vsub.s32 0, %v65
    %v67 = vrot.slane %v62, %v66
    %v68 = vlaneseq
    %v69 = vshrl.u32 %v68, 7
    %v70 = vsub.s32 1, %v69
    %v71 = vrot.slane %v62, %v70
    %vm74 = vcmask 261120
    %v76 = vsel %vm74, %v61, 0
    %78 = vmatprep.subr.mxu0 0.0
    %79 = vmatpush1.msra.mxu0 0.0
    %80 = vmatprep.subr.mxu0 0.0
    %81 = vmatpush1.msra.mxu0 0.0
    %82 = vmatprep.subr.mxu0 0.0
    %83 = vmatpush1.msra.mxu0 0.0
    %84 = vmatprep.subr.mxu0 0.0
    %85 = vmatpush1.msra.mxu0 0.0
    %86 = vmatprep.subr.mxu0 0.0
    %87 = vmatpush1.msra.mxu0 0.0
    %88 = vmatprep.subr.mxu0 0.0
    %89 = vmatpush1.msra.mxu0 0.0
    %90 = vmatprep.subr.mxu0 0.0
    %91 = vmatpush1.msra.mxu0 0.0
    %92 = vmatprep.subr.mxu0 0.0
    %93 = vmatpush1.msra.mxu0 0.0
    %94 = vmatprep.subr.mxu0 0.0
    %95 = vmatpush1.msra.mxu0 0.0
    %96 = vmatprep.subr.mxu0 0.0
    %97 = vmatpush1.msra.mxu0 0.0
    %98 = vmatprep.subr.mxu0 0.0
    %99 = vmatpush1.msra.mxu0 0.0
    %100 = vmatprep.subr.mxu0 0.0
    %101 = vmatpush1.msra.mxu0 0.0
    %102 = vmatprep.subr.mxu0 %v28
    %103 = vmatpush1.msra.mxu0 %v27
    %104 = vmatprep.subr.mxu0 %v26
    %105 = vmatpush1.msra.mxu0 %v25
    %106 = vmatprep.subr.mxu0 %v24
    %107 = vmatpush1.msra.mxu0 %v23
    %108 = vmatprep.subr.mxu0 %v22
    %109 = vmatpush1.msra.mxu0 %v21
    %110 = vmatprep.subr.mxu0 0.0
    %111 = vmatpush2.msra.mxu0 0.0
    %112 = vmatprep.subr.mxu0 0.0
    %113 = vmatpush2.msra.mxu0 0.0
    %114 = vmatprep.subr.mxu0 0.0
    %115 = vmatpush2.msra.mxu0 0.0
    %116 = vmatprep.subr.mxu0 0.0
    %117 = vmatpush2.msra.mxu0 0.0
    %118 = vmatprep.subr.mxu0 0.0
    %119 = vmatpush2.msra.mxu0 0.0
    %120 = vmatprep.subr.mxu0 0.0
    %121 = vmatpush2.msra.mxu0 0.0
    %122 = vmatprep.subr.mxu0 0.0
    %123 = vmatpush2.msra.mxu0 0.0
    %124 = vmatprep.subr.mxu0 0.0
    %125 = vmatpush2.msra.mxu0 0.0
    %126 = vmatprep.subr.mxu0 0.0
    %127 = vmatpush2.msra.mxu0 0.0
    %128 = vmatprep.subr.mxu0 0.0
    %129 = vmatpush2.msra.mxu0 0.0
    %130 = vmatprep.subr.mxu0 0.0
    %131 = vmatpush2.msra.mxu0 0.0
    %132 = vmatprep.subr.mxu0 0.0
    %133 = vmatpush2.msra.mxu0 0.0
    %134 = vmatprep.subr.mxu0 0.0
    %135 = vmatpush2.msra.mxu0 0.0
    %136 = vmatprep.subr.mxu0 0.0
    %137 = vmatpush2.msra.mxu0 0.0
    %138 = vmatprep.subr.mxu0 0.0
    %139 = vmatpush2.msra.mxu0 0.0
    %140 = vmatprep.subr.mxu0 0.0
    %141 = vmatpush2.msra.mxu0 0.0
    %142 = vmatprep.mubr.f32.mxu0 0.0
    %143 = vmatmul.mubr.f32.gmra.mxu0 %v76
    %v144 = vpop.f32.mrf.mxu0
    %v145 = vadd.f32 %v67, %v144
    %v146 = vpop.f32.mrf.mxu0
    %v147 = vadd.f32 %v71, %v146
    %148 = vdwg.mxu0
    %v149 = vmax.f32 %v145, 0.0
    %v150 = vmax.f32 %v147, 0.0
    %v151 = vld [vmem:[%s4] sm:$0x1]
    %v153 = vlaneseq
    %v154 = vshrl.u32 %v153, 7
    %v155 = vsub.s32 0, %v154
    %v156 = vrot.slane %v151, %v155
    %158 = vmatprep.subr.mxu0 0.0
    %159 = vmatpush1.msra.mxu0 %v44
    %160 = vmatprep.subr.mxu0 0.0
    %161 = vmatpush1.msra.mxu0 %v43
    %162 = vmatprep.subr.mxu0 0.0
    %163 = vmatpush1.msra.mxu0 %v42
    %164 = vmatprep.subr.mxu0 0.0
    %165 = vmatpush1.msra.mxu0 %v41
    %166 = vmatprep.subr.mxu0 0.0
    %167 = vmatpush1.msra.mxu0 %v40
    %168 = vmatprep.subr.mxu0 0.0
    %169 = vmatpush1.msra.mxu0 %v39
    %170 = vmatprep.subr.mxu0 0.0
    %171 = vmatpush1.msra.mxu0 %v38
    %172 = vmatprep.subr.mxu0 0.0
    %173 = vmatpush1.msra.mxu0 %v37
    %174 = vmatprep.subr.mxu0 0.0
    %175 = vmatpush1.msra.mxu0 %v36
    %176 = vmatprep.subr.mxu0 0.0
    %177 = vmatpush1.msra.mxu0 %v35
    %178 = vmatprep.subr.mxu0 0.0
    %179 = vmatpush1.msra.mxu0 %v34
    %180 = vmatprep.subr.mxu0 0.0
    %181 = vmatpush1.msra.mxu0 %v33
    %182 = vmatprep.subr.mxu0 0.0
    %183 = vmatpush1.msra.mxu0 %v32
    %184 = vmatprep.subr.mxu0 0.0
    %185 = vmatpush1.msra.mxu0 %v31
    %186 = vmatprep.subr.mxu0 0.0
    %187 = vmatpush1.msra.mxu0 %v30
    %188 = vmatprep.subr.mxu0 0.0
    %189 = vmatpush1.msra.mxu0 %v29
    %190 = vmatprep.subr.mxu0 0.0
    %191 = vmatpush2.msra.mxu0 %v60
    %192 = vmatprep.subr.mxu0 0.0
    %193 = vmatpush2.msra.mxu0 %v59
    %194 = vmatprep.subr.mxu0 0.0
    %195 = vmatpush2.msra.mxu0 %v58
    %196 = vmatprep.subr.mxu0 0.0
    %197 = vmatpush2.msra.mxu0 %v57
    %198 = vmatprep.subr.mxu0 0.0
    %199 = vmatpush2.msra.mxu0 %v56
    %200 = vmatprep.subr.mxu0 0.0
    %201 = vmatpush2.msra.mxu0 %v55
    %202 = vmatprep.subr.mxu0 0.0
    %203 = vmatpush2.msra.mxu0 %v54
    %204 = vmatprep.subr.mxu0 0.0
    %205 = vmatpush2.msra.mxu0 %v53
    %206 = vmatprep.subr.mxu0 0.0
    %207 = vmatpush2.msra.mxu0 %v52
    %208 = vmatprep.subr.mxu0 0.0
    %209 = vmatpush2.msra.mxu0 %v51
    %210 = vmatprep.subr.mxu0 0.0
    %211 = vmatpush2.msra.mxu0 %v50
    %212 = vmatprep.subr.mxu0 0.0
    %213 = vmatpush2.msra.mxu0 %v49
    %214 = vmatprep.subr.mxu0 0.0
    %215 = vmatpush2.msra.mxu0 %v48
    %216 = vmatprep.subr.mxu0 0.0
    %217 = vmatpush2.msra.mxu0 %v47
    %218 = vmatprep.subr.mxu0 0.0
    %219 = vmatpush2.msra.mxu0 %v46
    %220 = vmatprep.subr.mxu0 0.0
    %221 = vmatpush2.msra.mxu0 %v45
    %222 = vmatprep.mubr.f32.mxu0 %v150
    %223 = vmatmul.mubr.f32.gmra.mxu0 %v149
    %v224 = vpop.f32.mrf.mxu0
    %v225 = vadd.f32 %v156, %v224
    %v226 = vpop.f32.mrf.mxu0
    %227 = vdwg.mxu0
    %vm228 = vcmask 130048
    %229 = vst.msk [vmem:[#allocation2] sm:$0xff] %vm228, %v225
    // Predicated region
    $region22: #{generator_forward.1} parent=1 // pred_check
      _
    $region23: #{generator_forward.1} parent=1 // pred_check_branch
      %231 = sbr.rel (0) target = $region25
    $region24: #{generator_forward.1} parent=1 // pred_region
      %s233 = ssub.s32 128, 128
      %234 = vsyncadd [#allocation3], %s233
      %s236 = sshll.u32 [#allocation2], 4
      %s237 = int_to_ptr.vmem [resolvable:$true] %s236
      %239 = dma.vmem_to_hbm [thread:$0]  %s237, 128, %s5, [#allocation3]
    $region25: #{generator_forward.1} parent=1 // pred_fallthru
      _
    // Predicated region
    $region26: #{generator_forward.1} parent=1 // pred_check
      _
    $region27: #{generator_forward.1} parent=1 // pred_check_branch
      %241 = sbr.rel (0) target = $region29
    $region28: #{generator_forward.1} parent=1 // pred_region
      %242 = dma.done [#allocation3], 128
    $region29: #{generator_forward.1} parent=1 // pred_fallthru
      _
    %243 = vsyncpa [#allocation3], 1

</llo_original>
